<compile_context>
chip_gen: v5e
topology: v5e:2x2
jax: 0.10.0
libtpu: 0.0.40
codegen_flags: <defaults>
</compile_context>

<pallas_src>
import functools

import jax
import jax.numpy as jnp
from jax.experimental import pallas as pl
from jax.experimental.pallas import tpu as pltpu

IN_FEATURES = 10   # nn.Linear(10, 1)
PACK = 8           # batch rows packed per lane-row (one sublane granule)


def packed_linear_kernel(xp_ref, wsel_ref, b_ref, o_ref):
    # xp_ref:   (TR, PACK*IN) VMEM  -- 8 batch rows packed along lanes
    # wsel_ref: (PACK*IN, PACK) VMEM -- block-diagonal weights
    # b_ref:    (1,) SMEM            -- bias scalar
    # o_ref:    (TR, PACK) VMEM      -- 8 outputs per packed row (lane-dense-ish)
    acc = jnp.dot(xp_ref[...], wsel_ref[...],
                  preferred_element_type=jnp.float32)      # f32 accumulate
    o_ref[...] = (acc + b_ref[0]).astype(o_ref.dtype)


def prepare_params(weight, bias):
    """One-time repack of PyTorch nn.Linear(10, 1) parameters.

    weight: (OUT, IN) PyTorch layout; OUT must be 1.
    Returns:
      wsel: (PACK*IN, PACK) f32 block-diagonal weight, wsel[g*IN + j, g] = w[j]
      b1d:  (1,) f32 bias for SMEM
    Done once outside the forward path -- no per-call reshape/transpose.
    """
    out_features, in_features = weight.shape
    assert out_features == 1, "kernel implements the OUT==1 SimpleNN layer"
    assert in_features == IN_FEATURES
    w_col = weight.reshape(in_features, 1).astype(jnp.float32)
    wsel = jnp.kron(jnp.eye(PACK, dtype=jnp.float32), w_col)   # (80, 8)
    b1d = bias.reshape(1).astype(jnp.float32)
    return wsel, b1d


@functools.partial(jax.jit, static_argnames=("block_rows",))
def simple_nn_forward(x, wsel, b1d, *, block_rows=4096):
    """x: (B, 10); wsel: (80, 8); b1d: (1,). Returns (B, 1) in x.dtype."""
    B, in_features = x.shape
    pack = wsel.shape[1]
    assert wsel.shape[0] == pack * in_features

    # Pad batch to a multiple of PACK (zeros), then pack 8 rows per lane-row.
    b_pad = ((B + pack - 1) // pack) * pack
    if b_pad != B:
        x = jnp.concatenate(
            [x, jnp.zeros((b_pad - B, in_features), x.dtype)], axis=0)
    R = b_pad // pack
    xp = x.reshape(R, pack * in_features)        # free row-major reshape

    if R <= block_rows:
        # Gridless single-block call: no pipeline prologue/epilogue overhead.
        y_packed = pl.pallas_call(
            packed_linear_kernel,
            out_shape=jax.ShapeDtypeStruct((R, pack), jnp.float32),
            in_specs=[
                pl.BlockSpec(memory_space=pltpu.MemorySpace.VMEM),   # xp
                pl.BlockSpec(memory_space=pltpu.MemorySpace.VMEM),   # wsel
                pl.BlockSpec(memory_space=pltpu.MemorySpace.SMEM),   # bias
            ],
            out_specs=pl.BlockSpec(memory_space=pltpu.MemorySpace.VMEM),
        )(xp, wsel, b1d)
    else:
        # Large-B path: tile the packed-row axis; "parallel" lets v7x shard
        # the batch axis across its 2 TensorCores (harmless on v5e/v6e).
        tr = block_rows
        y_packed = pl.pallas_call(
            packed_linear_kernel,
            out_shape=jax.ShapeDtypeStruct((R, pack), jnp.float32),
            grid_spec=pltpu.PrefetchScalarGridSpec(
                num_scalar_prefetch=0,
                grid=(pl.cdiv(R, tr),),
                in_specs=[
                    pl.BlockSpec((tr, pack * in_features), lambda i: (i, 0)),
                    pl.BlockSpec((pack * in_features, pack), lambda i: (0, 0)),
                    pl.BlockSpec(memory_space=pltpu.MemorySpace.SMEM),
                ],
                out_specs=pl.BlockSpec((tr, pack), lambda i: (i, 0)),
            ),
            compiler_params=pltpu.CompilerParams(
                dimension_semantics=("parallel",),
            ),
        )(xp, wsel, b1d)

    # Lane-dense (R, 8) slab -> (B, 1); the reshape/slice is wrapper-side only.
    return y_packed.reshape(b_pad, 1)[:B].astype(x.dtype)


if __name__ == "__main__":
    key = jax.random.PRNGKey(0)
    k_x, k_w, k_b, k_x2 = jax.random.split(key, 4)

    B, IN, OUT = 8, IN_FEATURES, 1

    # PyTorch nn.Linear default init: U(-1/sqrt(IN), 1/sqrt(IN)).
    bound = 1.0 / float(IN ** 0.5)

    # Inputs/params are rounded to bf16-representable f32 values so the
    # correctness check is exact regardless of how many MXU passes the
    # compiler uses for the f32 contraction (single-pass bf16 vs full f32).
    def bf16_representable(a):
        return a.astype(jnp.bfloat16).astype(jnp.float32)

    weight = bf16_representable(
        jax.random.uniform(k_w, (OUT, IN), jnp.float32, -bound, bound))
    bias = bf16_representable(
        jax.random.uniform(k_b, (OUT,), jnp.float32, -bound, bound))

    # Repack parameters once (outside the forward path).
    wsel, b1d = prepare_params(weight, bias)

    # --- small batch: gridless single-block path ---------------------------
    x = bf16_representable(jax.random.normal(k_x, (B, IN), jnp.float32))
    y = jax.block_until_ready(simple_nn_forward(x, wsel, b1d))
    y_ref = x @ weight.T + bias
    assert y.shape == (B, OUT)
    assert jnp.allclose(y, y_ref, atol=1e-4, rtol=1e-4), "small-batch mismatch"

    # --- larger batch: tiled "parallel"-grid path + odd-B padding ----------
    B2 = 20003
    x2 = bf16_representable(jax.random.normal(k_x2, (B2, IN), jnp.float32))
    y2 = jax.block_until_ready(
        simple_nn_forward(x2, wsel, b1d, block_rows=512))
    y2_ref = x2 @ weight.T + bias
    assert y2.shape == (B2, OUT)
    assert jnp.allclose(y2, y2_ref, atol=1e-4, rtol=1e-4), "large-batch mismatch"

    print("KERNEL_OK")
</pallas_src>

<mosaic_0001>
module attributes {stable_mosaic.version = 11 : i64} {
  func.func @packed_linear_kernel(%arg0: memref<1x80xf32, #tpu.memory_space<vmem>>, %arg1: memref<80x8xf32, #tpu.memory_space<vmem>>, %arg2: memref<1xf32, #tpu.memory_space<smem>>, %arg3: memref<1x8xf32, #tpu.memory_space<vmem>>) attributes {dimension_semantics = [], scalar_prefetch = 0 : i64, scratch_operands = 0 : i64, tpu.core_type = #tpu.core_type<tc>} {
    %c0 = arith.constant 0 : index
    %c0_0 = arith.constant 0 : index
    %0 = vector.load %arg0[%c0, %c0_0] : memref<1x80xf32, #tpu.memory_space<vmem>>, vector<1x80xf32>
    %c0_1 = arith.constant 0 : index
    %c0_2 = arith.constant 0 : index
    %1 = vector.load %arg1[%c0_1, %c0_2] : memref<80x8xf32, #tpu.memory_space<vmem>>, vector<80x8xf32>
    %cst = arith.constant dense<0.000000e+00> : vector<1x8xf32>
    %2 = tpu.matmul %0, %1, %cst {dimension_numbers = #tpu.dot_dimension_numbers<[1], [0], [0], [1], [0, 0, 1, 1], [], []>} : vector<1x80xf32>, vector<80x8xf32>, vector<1x8xf32> -> vector<1x8xf32>
    %c0_3 = arith.constant 0 : index
    %3 = memref.load %arg2[%c0_3] : memref<1xf32, #tpu.memory_space<smem>>
    %4 = vector.broadcast %3 : f32 to vector<1x8xf32>
    %5 = arith.addf %2, %4 : vector<1x8xf32>
    %c0_4 = arith.constant 0 : index
    %c0_5 = arith.constant 0 : index
    %6 = vector.load %arg3[%c0_4, %c0_5] : memref<1x8xf32, #tpu.memory_space<vmem>>, vector<1x8xf32>
    tpu.vector_store %arg3[%c0_4, %c0_5], %5 {strides = array<i32>} : memref<1x8xf32, #tpu.memory_space<vmem>>, vector<1x8xf32>,
    return
  }
}

</mosaic_0001>

<llo_original>
// kernel: simple_nn_forward.1
$region0: #{simple_nn_forward.1}
  #allocation0 [shape = 'u32[]', space=smem, size = 0x4, offset = 0x4, fixed_abs, tag = 'smem constant byte address 0x4 - core index']
  #allocation1 [shape = 'u32[72,128]{1,0:T(1,128)}', space=vmem, size = 0x9000, scoped, tag = 'internal scratch']
  #allocation2 [shape = 'f32[1]{0:T(128)S(6)}', space=smem, size = 0x200, scoped, tag = 'scoped memory for simple_nn_forward.1']
  %s0 = inlined_call_operand.vmem [shape: f32[1,80], index: 0, kind: input, shape index: {}]
  %s1 = inlined_call_operand.vmem [shape: f32[80,8], index: 1, kind: input, shape index: {}]
  %s2 = inlined_call_operand.<no memory space> [shape: f32[1], index: 2, kind: input, shape index: {}]
  %s3 = inlined_call_operand.hbm [shape: f32[1,8], index: 3, kind: output, shape index: {}]
  %s4 = sld [smem:[#allocation0]]
  $region22: #{simple_nn_forward.1} parent=0
    _
  %s6 = ssub.s32 1, %s4
  %s7 = scalar_select 0, %s6, %s4
  %8 = sst [smem:[#allocation2]] %s2
  $region1: #{simple_nn_forward.1} parent=0
    #allocation3 [shape = 'u8[512]{0}', space=vmem, size = 0x400, scoped, tag = 'output window, operand 0, single buffered']
    #allocation4 [shape = 's32[1]{0}', space=sflag, size = 0x4, scoped, tag = 'scoped memory for simple_nn_forward.1']
    %9 = vsyncpa [#allocation4], 0
    // Predicated region
    $region2: #{simple_nn_forward.1} parent=1 // pred_check
      _
    $region3: #{simple_nn_forward.1} parent=1 // pred_check_branch
      %11 = sbr.rel (0) target = $region5
    $region4: #{simple_nn_forward.1} parent=1 // pred_region
      _
    $region5: #{simple_nn_forward.1} parent=1 // pred_fallthru
      _
    // Predicated region
    $region6: #{simple_nn_forward.1} parent=1 // pred_check
      _
    $region7: #{simple_nn_forward.1} parent=1 // pred_check_branch
      %13 = sbr.rel (0) target = $region9
    $region8: #{simple_nn_forward.1} parent=1 // pred_region
      _
    $region9: #{simple_nn_forward.1} parent=1 // pred_fallthru
      _
    // Predicated region
    $region10: #{simple_nn_forward.1} parent=1 // pred_check
      _
    $region11: #{simple_nn_forward.1} parent=1 // pred_check_branch
      %15 = sbr.rel (0) target = $region13
    $region12: #{simple_nn_forward.1} parent=1 // pred_region
      _
    $region13: #{simple_nn_forward.1} parent=1 // pred_fallthru
      _
    %v16 = vld [vmem:[%s0] sm:$0x1]
    %v17 = vld [vmem:[%s1] sm:$0xff]
    %v18 = vld [vmem:[%s1 + $0x8] sm:$0xff]
    %v19 = vld [vmem:[%s1 + $0x10] sm:$0xff]
    %v20 = vld [vmem:[%s1 + $0x18] sm:$0xff]
    %v21 = vld [vmem:[%s1 + $0x20] sm:$0xff]
    %v22 = vld [vmem:[%s1 + $0x28] sm:$0xff]
    %v23 = vld [vmem:[%s1 + $0x30] sm:$0xff]
    %v24 = vld [vmem:[%s1 + $0x38] sm:$0xff]
    %v25 = vld [vmem:[%s1 + $0x40] sm:$0xff]
    %v26 = vld [vmem:[%s1 + $0x48] sm:$0xff]
    %s27 = sld [smem:[#allocation2]]
    %v28 = vstv %s27
    %vm29 = vcmask 654336
    %v31 = vsel %vm29, %v16, 0
    %33 = vmatpush.msra.mxu0 0.0
    %34 = vmatpush.msra.mxu0 0.0
    %35 = vmatpush.msra.mxu0 0.0
    %36 = vmatpush.msra.mxu0 0.0
    %37 = vmatpush.msra.mxu0 0.0
    %38 = vmatpush.msra.mxu0 0.0
    %39 = vmatpush.msra.mxu0 %v26
    %40 = vmatpush.msra.mxu0 %v25
    %41 = vmatpush.msra.mxu0 %v24
    %42 = vmatpush.msra.mxu0 %v23
    %43 = vmatpush.msra.mxu0 %v22
    %44 = vmatpush.msra.mxu0 %v21
    %45 = vmatpush.msra.mxu0 %v20
    %46 = vmatpush.msra.mxu0 %v19
    %47 = vmatpush.msra.mxu0 %v18
    %48 = vmatpush.msra.mxu0 %v17
    %49 = vmatmul.f32.gmra.mxu0 %v31
    %v50 = vpop.f32.mrf.mxu0
    %v51 = vadd.f32 %v28, %v50
    %52 = vdwg.mxu0
    %vm53 = vcmask 57344
    %54 = vst.msk [vmem:[#allocation3] sm:$0x1] %vm53, %v51
    // Predicated region
    $region14: #{simple_nn_forward.1} parent=1 // pred_check
      _
    $region15: #{simple_nn_forward.1} parent=1 // pred_check_branch
      %56 = sbr.rel (0) target = $region17
    $region16: #{simple_nn_forward.1} parent=1 // pred_region
      %58 = vsyncadd [#allocation4], 0
      %s60 = sshll.u32 [#allocation3], 4
      %s61 = int_to_ptr.vmem [resolvable:$true] %s60
      %s62 = sshll.u32 %s3, 4
      %s63 = int_to_ptr.hbm [resolvable:$true] %s62
      %65 = dma.vmem_to_hbm [thread:$0]  %s61, 16, %s63, [#allocation4]
    $region17: #{simple_nn_forward.1} parent=1 // pred_fallthru
      _
    // Predicated region
    $region18: #{simple_nn_forward.1} parent=1 // pred_check
      _
    $region19: #{simple_nn_forward.1} parent=1 // pred_check_branch
      %67 = sbr.rel (0) target = $region21
    $region20: #{simple_nn_forward.1} parent=1 // pred_region
      %69 = dma.done [#allocation4], 16
    $region21: #{simple_nn_forward.1} parent=1 // pred_fallthru
      _
    %70 = vsyncpa [#allocation4], 1

</llo_original>
